<compile_context>
chip_gen: v7x
topology: tpu7x:2x2x1
jax: 0.10.0
libtpu: 0.0.40
codegen_flags: <defaults>
</compile_context>

<pallas_src>
import functools

import jax
import jax.numpy as jnp
from jax.experimental import pallas as pl
from jax.experimental.pallas import tpu as pltpu

_EPS = 0.01
_LANES = 128
_MAX_TILE_ROWS = 2048   # (2048, 128) f32 = 1 MiB per input block
_NUM_PARTS = 2          # per-core partial sums (2 TCs on v7x; harmless elsewhere)


def _hdr_loss_kernel(d_ref, t_ref, o_ref, acc_ref, *, eps, m_rows, tile_rows,
                     tiles_per_part):
    t = pl.program_id(1)

    @pl.when(t == 0)
    def _():
        acc_ref[...] = jnp.zeros_like(acc_ref)

    d = d_ref[...].astype(jnp.float32)
    tgt = t_ref[...].astype(jnp.float32)
    num = (d - tgt) * (d - tgt)
    den = (d + eps) * (d + eps)
    loss = num * pl.reciprocal(den, approx=False)

    # Mask rows outside the real array (ragged last tile / clamped tiles of the
    # last part).  Uses *logical* indices from the program ids, so it never
    # depends on what data the (possibly clamped) DMA actually loaded.
    logical_tile = pl.program_id(0) * tiles_per_part + t
    start_row = logical_tile * tile_rows
    row_ids = start_row + jax.lax.broadcasted_iota(jnp.int32, loss.shape, 0)
    acc_ref[...] += jnp.where(row_ids < m_rows, loss, 0.0)

    @pl.when(t == pl.num_programs(1) - 1)
    def _():
        # Single XLU reduce per part; broadcast the partial over the (8, 128)
        # output tile (wrapper reads element [0, 0]).
        o_ref[...] = jnp.full(o_ref.shape, jnp.sum(acc_ref[...]),
                              dtype=jnp.float32)


def hdr_loss(denoised, target, eps=_EPS):
    """Pallas implementation of HDRLoss.forward; returns a scalar float32."""
    assert denoised.shape == target.shape
    n_elems = denoised.size

    d_flat = jnp.ravel(denoised)
    t_flat = jnp.ravel(target)

    m_rows = pl.cdiv(n_elems, _LANES)
    padded_n = m_rows * _LANES
    if padded_n != n_elems:
        # Rare ragged-lane case: tiny pad (< 128 elems); zero pad contributes
        # (0-0)^2/(0+eps)^2 == 0 and sits inside row m_rows-1 (unmasked but 0).
        d_flat = jnp.pad(d_flat, (0, padded_n - n_elems))
        t_flat = jnp.pad(t_flat, (0, padded_n - n_elems))

    d2 = d_flat.reshape(m_rows, _LANES)
    t2 = t_flat.reshape(m_rows, _LANES)

    tile_rows = min(_MAX_TILE_ROWS, ((m_rows + 7) // 8) * 8)
    num_tiles = pl.cdiv(m_rows, tile_rows)
    num_parts = _NUM_PARTS if num_tiles >= _NUM_PARTS else 1
    tiles_per_part = pl.cdiv(num_tiles, num_parts)

    def in_index_map(p, t):
        logical = p * tiles_per_part + t
        # Clamp so the DMA source block is always in range; out-of-range work
        # is zeroed in-kernel via the logical row mask.
        return (jnp.minimum(logical, num_tiles - 1), 0)

    kernel = functools.partial(
        _hdr_loss_kernel,
        eps=float(eps),
        m_rows=m_rows,
        tile_rows=tile_rows,
        tiles_per_part=tiles_per_part,
    )

    partials = pl.pallas_call(
        kernel,
        out_shape=jax.ShapeDtypeStruct((num_parts, 8, _LANES), jnp.float32),
        grid=(num_parts, tiles_per_part),
        in_specs=[
            pl.BlockSpec((tile_rows, _LANES), in_index_map),
            pl.BlockSpec((tile_rows, _LANES), in_index_map),
        ],
        out_specs=pl.BlockSpec((1, 8, _LANES), lambda p, t: (p, 0, 0)),
        scratch_shapes=[pltpu.VMEM((tile_rows, _LANES), jnp.float32)],
        compiler_params=pltpu.CompilerParams(
            dimension_semantics=("parallel", "arbitrary"),
        ),
    )(d2, t2)

    return jnp.sum(partials[:, 0, 0]) / jnp.float32(n_elems)


def hdr_loss_ref(denoised, target, eps=_EPS):
    loss = (denoised - target) ** 2 / (denoised + eps) ** 2
    return jnp.mean(loss.reshape(-1))


if __name__ == "__main__":
    key = jax.random.PRNGKey(0)
    k1, k2 = jax.random.split(key)
    # Small NCHW render buffers, strictly positive like HDR radiance values.
    denoised = jax.random.uniform(k1, (2, 4, 16, 16), dtype=jnp.float32,
                                  minval=0.0, maxval=4.0)
    target = jax.random.uniform(k2, (2, 4, 16, 16), dtype=jnp.float32,
                                minval=0.0, maxval=4.0)

    out = hdr_loss(denoised, target)
    out = jax.block_until_ready(out)

    ref = hdr_loss_ref(denoised, target)
    assert jnp.allclose(out, ref, rtol=1e-5, atol=1e-6), (out, ref)
    print("KERNEL_OK")
</pallas_src>

<mosaic_0001>
module attributes {stable_mosaic.version = 11 : i64} {
  func.func @_hdr_loss_kernel(%arg0: i32, %arg1: i32, %arg2: memref<16x128xf32, #tpu.memory_space<vmem>>, %arg3: memref<16x128xf32, #tpu.memory_space<vmem>>, %arg4: memref<1x8x128xf32, #tpu.memory_space<vmem>>, %arg5: memref<16x128xf32, #tpu.memory_space<vmem>>) attributes {dimension_semantics = [#tpu.dimension_semantics<parallel>, #tpu.dimension_semantics<arbitrary>], iteration_bounds = array<i64: 1, 1>, scalar_prefetch = 0 : i64, scratch_operands = 1 : i64, tpu.core_type = #tpu.core_type<tc>, window_params = [{transform_indices = @transform_0, window_bounds = array<i64: 16, 128>}, {transform_indices = @transform_1, window_bounds = array<i64: 16, 128>}, {transform_indices = @transform_2, window_bounds = array<i64: 1, 8, 128>}]} {
    %c0_i32 = arith.constant 0 : i32
    %0 = arith.cmpi eq, %arg1, %c0_i32 : i32
    %1 = arith.extui %0 : i1 to i32
    %c0_i32_0 = arith.constant 0 : i32
    %2 = arith.cmpi ne, %1, %c0_i32_0 : i32
    scf.if %2 {
      %cst_13 = arith.constant 0.000000e+00 : f32
      %31 = vector.broadcast %cst_13 : f32 to vector<16x128xf32>
      %c0_14 = arith.constant 0 : index
      %c0_15 = arith.constant 0 : index
      %32 = vector.load %arg5[%c0_14, %c0_15] : memref<16x128xf32, #tpu.memory_space<vmem>>, vector<16x128xf32>
      tpu.vector_store %arg5[%c0_14, %c0_15], %31 {strides = array<i32>} : memref<16x128xf32, #tpu.memory_space<vmem>>, vector<16x128xf32>,
    } else {
    }
    %c0 = arith.constant 0 : index
    %c0_1 = arith.constant 0 : index
    %3 = vector.load %arg2[%c0, %c0_1] : memref<16x128xf32, #tpu.memory_space<vmem>>, vector<16x128xf32>
    %c0_2 = arith.constant 0 : index
    %c0_3 = arith.constant 0 : index
    %4 = vector.load %arg3[%c0_2, %c0_3] : memref<16x128xf32, #tpu.memory_space<vmem>>, vector<16x128xf32>
    %5 = arith.subf %3, %4 : vector<16x128xf32>
    %6 = arith.subf %3, %4 : vector<16x128xf32>
    %7 = arith.mulf %5, %6 : vector<16x128xf32>
    %cst = arith.constant 0.00999999977 : f32
    %8 = vector.broadcast %cst : f32 to vector<16x128xf32>
    %9 = arith.addf %3, %8 : vector<16x128xf32>
    %cst_4 = arith.constant 0.00999999977 : f32
    %10 = vector.broadcast %cst_4 : f32 to vector<16x128xf32>
    %11 = arith.addf %3, %10 : vector<16x128xf32>
    %12 = arith.mulf %9, %11 : vector<16x128xf32>
    %13 = tpu.reciprocal %12 : vector<16x128xf32> -> vector<16x128xf32>
    %14 = arith.mulf %7, %13 : vector<16x128xf32>
    %c1_i32 = arith.constant 1 : i32
    %15 = arith.muli %arg0, %c1_i32 : i32
    %16 = arith.addi %15, %arg1 : i32
    %c16_i32 = arith.constant 16 : i32
    %17 = arith.muli %16, %c16_i32 : i32
    %18 = tpu.iota {dimensions = array<i32: 0>} : vector<16x128xi32>
    %19 = vector.broadcast %17 : i32 to vector<16x128xi32>
    %20 = arith.addi %19, %18 : vector<16x128xi32>
    %c0_5 = arith.constant 0 : index
    %c0_6 = arith.constant 0 : index
    %21 = vector.load %arg5[%c0_5, %c0_6] : memref<16x128xf32, #tpu.memory_space<vmem>>, vector<16x128xf32>
    %c16_i32_7 = arith.constant 16 : i32
    %22 = vector.broadcast %c16_i32_7 : i32 to vector<16x128xi32>
    %23 = arith.cmpi slt, %20, %22 : vector<16x128xi32>
    %cst_8 = arith.constant 0.000000e+00 : f32
    %24 = vector.broadcast %cst_8 : f32 to vector<16x128xf32>
    %25 = arith.select %23, %14, %24 : vector<16x128xi1>, vector<16x128xf32>
    %26 = arith.addf %21, %25 : vector<16x128xf32>
    %c0_9 = arith.constant 0 : index
    %c0_10 = arith.constant 0 : index
    %27 = vector.load %arg5[%c0_9, %c0_10] : memref<16x128xf32, #tpu.memory_space<vmem>>, vector<16x128xf32>
    tpu.vector_store %arg5[%c0_9, %c0_10], %26 {strides = array<i32>} : memref<16x128xf32, #tpu.memory_space<vmem>>, vector<16x128xf32>,
    %c0_i32_11 = arith.constant 0 : i32
    %28 = arith.cmpi eq, %arg1, %c0_i32_11 : i32
    %29 = arith.extui %28 : i1 to i32
    %c0_i32_12 = arith.constant 0 : i32
    %30 = arith.cmpi ne, %29, %c0_i32_12 : i32
    scf.if %30 {
      %c0_13 = arith.constant 0 : index
      %c0_14 = arith.constant 0 : index
      %31 = vector.load %arg5[%c0_13, %c0_14] : memref<16x128xf32, #tpu.memory_space<vmem>>, vector<16x128xf32>
      %32 = vector.shape_cast %31 : vector<16x128xf32> to vector<1x16x128xf32>
      %cst_15 = arith.constant dense<0.000000e+00> : vector<1xf32>
      %33 = vector.multi_reduction <add>, %32, %cst_15 [1, 2] : vector<1x16x128xf32> to vector<1xf32>
      %34 = vector.shape_cast %33 : vector<1xf32> to vector<1x1x1xf32>
      %35 = vector.extract %34[0, 0, 0] : f32 from vector<1x1x1xf32>
      %36 = vector.broadcast %35 : f32 to vector<1x8x128xf32>
      %c0_16 = arith.constant 0 : index
      %c0_17 = arith.constant 0 : index
      %c0_18 = arith.constant 0 : index
      %37 = vector.load %arg4[%c0_16, %c0_17, %c0_18] : memref<1x8x128xf32, #tpu.memory_space<vmem>>, vector<1x8x128xf32>
      tpu.vector_store %arg4[%c0_16, %c0_17, %c0_18], %36 {strides = array<i32>} : memref<1x8x128xf32, #tpu.memory_space<vmem>>, vector<1x8x128xf32>,
    } else {
    }
    return
  }
  func.func @transform_0(%arg0: i32, %arg1: i32) -> (i32, i32) {
    %c1_i32 = arith.constant 1 : i32
    %0 = arith.muli %arg0, %c1_i32 : i32
    %1 = arith.addi %0, %arg1 : i32
    %c0_i32 = arith.constant 0 : i32
    %2 = arith.minsi %1, %c0_i32 : i32
    %c0_i32_0 = arith.constant 0 : i32
    %c0_i32_1 = arith.constant 0 : i32
    return %2, %c0_i32_0 : i32, i32
  }
  func.func @transform_1(%arg0: i32, %arg1: i32) -> (i32, i32) {
    %c1_i32 = arith.constant 1 : i32
    %0 = arith.muli %arg0, %c1_i32 : i32
    %1 = arith.addi %0, %arg1 : i32
    %c0_i32 = arith.constant 0 : i32
    %2 = arith.minsi %1, %c0_i32 : i32
    %c0_i32_0 = arith.constant 0 : i32
    %c0_i32_1 = arith.constant 0 : i32
    return %2, %c0_i32_0 : i32, i32
  }
  func.func @transform_2(%arg0: i32, %arg1: i32) -> (i32, i32, i32) {
    %c0_i32 = arith.constant 0 : i32
    %c0_i32_0 = arith.constant 0 : i32
    %c0_i32_1 = arith.constant 0 : i32
    return %arg0, %c0_i32, %c0_i32_0 : i32, i32, i32
  }
}

</mosaic_0001>

<llo_original>
// kernel: tpu_custom_call.1
$region0: #{tpu_custom_call.1}
  #allocation0 [shape = 'u32[]', space=smem, size = 0x4, offset = 0x4, fixed_abs, tag = 'smem constant byte address 0x4 - core index']
  #allocation1 [shape = 'u32[144,128]{1,0:T(1,128)}', space=vmem, size = 0x12000, scoped, tag = 'internal scratch']
  #allocation2 [shape = 'f32[16,128]{1,0:T(8,128)}', space=vmem, size = 0x2000, scoped, tag = 'scratch operand']
  %s0 = inlined_call_operand.hbm [shape: f32[16,128], index: 0, kind: input, shape index: {}]
  %s1 = inlined_call_operand.hbm [shape: f32[16,128], index: 1, kind: input, shape index: {}]
  %s2 = inlined_call_operand.hbm [shape: f32[1,8,128], index: 2, kind: output, shape index: {}]
  %s3 = sld [smem:[#allocation0]]
  $region34: #{tpu_custom_call.1} parent=0
    _
  %s5 = ssub.s32 1, %s3
  %s6 = scalar_select 0, %s5, %s3
  $region1: #{tpu_custom_call.1} parent=0
    #allocation3 [shape = 'u8[8192]{0}', space=vmem, size = 0x2000, scoped, tag = 'input window, operand 0, single buffered']
    #allocation4 [shape = 's32[1]{0}', space=sflag, size = 0x4, scoped, tag = 'scoped memory for tpu_custom_call.1']
    #allocation5 [shape = 's32[1]{0}', space=sflag, size = 0x4, scoped, tag = 'scoped memory for tpu_custom_call.1']
    #allocation6 [shape = 'u8[8192]{0}', space=vmem, size = 0x2000, scoped, tag = 'input window, operand 1, single buffered']
    #allocation7 [shape = 's32[1]{0}', space=sflag, size = 0x4, scoped, tag = 'scoped memory for tpu_custom_call.1']
    #allocation8 [shape = 'u8[4096]{0}', space=vmem, size = 0x1000, scoped, tag = 'output window, operand 0, single buffered']
    %7 = vsyncpa [#allocation4], 0
    %8 = vsyncpa [#allocation7], 0
    %9 = vsyncpa [#allocation5], 0
    // Predicated region
    $region2: #{tpu_custom_call.1} parent=1 // pred_check
      _
    $region3: #{tpu_custom_call.1} parent=1 // pred_check_branch
      %11 = sbr.rel (0) target = $region5
    $region4: #{tpu_custom_call.1} parent=1 // pred_region
      %s12 = sadd.s32 0, 0
      %p13 = scmp.lt.s32.totalorder %s12, 0
      %s14 = scalar_select %p13, %s12, 0
      %s15 = smul.u32 2, %s14
      %s17 = ssub.s32 256, 256
      %18 = vsyncadd [#allocation4], %s17
      %s19 = smul.addr %s15, 128
      %s20 = scalar_lea.hbm %s0, %s19
      %s21 = sshll.u32 [#allocation3], 4
      %s22 = int_to_ptr.vmem [resolvable:$true] %s21
      %27 = dma.hbm_to_vmem [thread:$0]  %s20, 256, %s22, [#allocation4], 128, 128, 8
    $region5: #{tpu_custom_call.1} parent=1 // pred_fallthru
      _
    // Predicated region
    $region6: #{tpu_custom_call.1} parent=1 // pred_check
      _
    $region7: #{tpu_custom_call.1} parent=1 // pred_check_branch
      %29 = sbr.rel (0) target = $region9
    $region8: #{tpu_custom_call.1} parent=1 // pred_region
      %s30 = sadd.s32 0, 0
      %p31 = scmp.lt.s32.totalorder %s30, 0
      %s32 = scalar_select %p31, %s30, 0
      %s33 = smul.u32 2, %s32
      %s35 = ssub.s32 256, 256
      %36 = vsyncadd [#allocation7], %s35
      %s37 = smul.addr %s33, 128
      %s38 = scalar_lea.hbm %s1, %s37
      %s39 = sshll.u32 [#allocation6], 4
      %s40 = int_to_ptr.vmem [resolvable:$true] %s39
      %45 = dma.hbm_to_vmem [thread:$0]  %s38, 256, %s40, [#allocation7], 128, 128, 8
    $region9: #{tpu_custom_call.1} parent=1 // pred_fallthru
      _
    // Predicated region
    $region10: #{tpu_custom_call.1} parent=1 // pred_check
      _
    $region11: #{tpu_custom_call.1} parent=1 // pred_check_branch
      %47 = sbr.rel (0) target = $region13
    $region12: #{tpu_custom_call.1} parent=1 // pred_region
      %48 = dma.done [#allocation4], 256
    $region13: #{tpu_custom_call.1} parent=1 // pred_fallthru
      _
    // Predicated region
    $region14: #{tpu_custom_call.1} parent=1 // pred_check
      _
    $region15: #{tpu_custom_call.1} parent=1 // pred_check_branch
      %50 = sbr.rel (0) target = $region17
    $region16: #{tpu_custom_call.1} parent=1 // pred_region
      %51 = dma.done [#allocation7], 256
    $region17: #{tpu_custom_call.1} parent=1 // pred_fallthru
      _
    %s52 = sadd.s32 0, 0
    %p53 = scmp.lt.s32.totalorder %s52, 0
    %s54 = scalar_select %p53, %s52, 0
    %s55 = smul.u32 2, %s54
    %s56 = sadd.s32 0, 0
    %p57 = scmp.lt.s32.totalorder %s56, 0
    %s58 = scalar_select %p57, %s56, 0
    %s59 = smul.u32 2, %s58
    %p60 = scmp.eq.s32.totalorder 0, 0
    // Predicated region
    $region18: #{tpu_custom_call.1} parent=1 // pred_check
      %p61 = pneg %p60
    $region19: #{tpu_custom_call.1} parent=1 // pred_check_branch
      %63 = sbr.rel (%p61) target = $region21
    $region20: #{tpu_custom_call.1} parent=1 // pred_region
      %64 = vst [vmem:[#allocation2] sm:$0xff] 0.0
      %65 = vst [vmem:[#allocation2 + $0x8] sm:$0xff] 0.0
    $region21: #{tpu_custom_call.1} parent=1 // pred_fallthru
      _
    %v66 = vld [vmem:[#allocation3] sm:$0xff]
    %v67 = vld [vmem:[#allocation3 + $0x8] sm:$0xff]
    %v68 = vld [vmem:[#allocation6] sm:$0xff]
    %v69 = vld [vmem:[#allocation6 + $0x8] sm:$0xff]
    %v70 = vsub.f32 %v66, %v68
    %v71 = vsub.f32 %v67, %v69
    %v72 = vmul.f32 %v70, %v70
    %v73 = vmul.f32 %v71, %v71
    %v74 = vadd.f32 %v66, 0.01
    %v75 = vadd.f32 %v67, 0.01
    %v76 = vmul.f32 %v74, %v74
    %v77 = vmul.f32 %v75, %v75
    %v78 = vrcp.pop %v76
    %v79 = vrcp.pop %v77
    %v80 = vmul.f32 %v72, %v78
    %v81 = vmul.f32 %v73, %v79
    %s82 = sadd.s32 0, 0
    %s83 = smul.u32 %s82, 16
    %v84 = vlaneseq
    %v85 = vshrl.u32 %v84, 7
    %v86 = vadd.s32 %v85, 8
    %v87 = vstv %s83
    %v88 = vadd.s32 %v87, %v85
    %v89 = vadd.s32 %v87, %v86
    %v90 = vld [vmem:[#allocation2] sm:$0xff]
    %v91 = vld [vmem:[#allocation2 + $0x8] sm:$0xff]
    %vm92 = vcmp.lt.s32.totalorder %v88, 16
    %vm93 = vcmp.lt.s32.totalorder %v89, 16
    %v94 = vsel %vm92, %v80, 0.0
    %v95 = vsel %vm93, %v81, 0.0
    %v96 = vadd.f32 %v90, %v94
    %v97 = vadd.f32 %v91, %v95
    %98 = vst [vmem:[#allocation2] sm:$0xff] %v96
    %99 = vst [vmem:[#allocation2 + $0x8] sm:$0xff] %v97
    // Predicated region
    $region22: #{tpu_custom_call.1} parent=1 // pred_check
      %p100 = pneg %p60
    $region23: #{tpu_custom_call.1} parent=1 // pred_check_branch
      %102 = sbr.rel (%p100) target = $region25
    $region24: #{tpu_custom_call.1} parent=1 // pred_region
      %v103 = vld [vmem:[#allocation2] sm:$0xff]
      %v104 = vld [vmem:[#allocation2 + $0x8] sm:$0xff]
      %v105 = vadd.f32 %v103, %v104
      %106 = vadd.xlane.f32.xlu0 %v105
      %v107 = vpop.xlane.xlu0 %106
      %v108 = vrot.slane %v107, 4
      %v109 = vadd.f32 %v107, %v108
      %v110 = vrot.slane %v109, 2
      %v111 = vadd.f32 %v109, %v110
      %v112 = vrot.slane %v111, 1
      %v113 = vadd.f32 %v111, %v112
      %s114 = vtos %v113
      %v115 = vstv %s114
      %116 = vst [vmem:[#allocation8] sm:$0xff] %v115
    $region25: #{tpu_custom_call.1} parent=1 // pred_fallthru
      _
    // Predicated region
    $region26: #{tpu_custom_call.1} parent=1 // pred_check
      _
    $region27: #{tpu_custom_call.1} parent=1 // pred_check_branch
      %118 = sbr.rel (0) target = $region29
    $region28: #{tpu_custom_call.1} parent=1 // pred_region
      %s120 = ssub.s32 128, 128
      %121 = vsyncadd [#allocation5], %s120
      %s123 = sshll.u32 [#allocation8], 4
      %s124 = int_to_ptr.vmem [resolvable:$true] %s123
      %126 = dma.vmem_to_hbm [thread:$0]  %s124, 128, %s2, [#allocation5]
    $region29: #{tpu_custom_call.1} parent=1 // pred_fallthru
      _
    // Predicated region
    $region30: #{tpu_custom_call.1} parent=1 // pred_check
      _
    $region31: #{tpu_custom_call.1} parent=1 // pred_check_branch
      %128 = sbr.rel (0) target = $region33
    $region32: #{tpu_custom_call.1} parent=1 // pred_region
      %129 = dma.done [#allocation5], 128
    $region33: #{tpu_custom_call.1} parent=1 // pred_fallthru
      _
    %130 = vsyncpa [#allocation4], 1
    %131 = vsyncpa [#allocation7], 1
    %132 = vsyncpa [#allocation5], 1

</llo_original>
